<compile_context>
chip_gen: v6e
topology: v6e:2x2x1
jax: 0.10.0
libtpu: 0.0.40
codegen_flags: <defaults>
</compile_context>

<pallas_src>
import functools

import jax
import jax.numpy as jnp
from jax import lax
from jax.experimental import pallas as pl
from jax.experimental.pallas import tpu as pltpu

NEG_SLOPE = 0.3   # nn.LeakyReLU(negative_slope=0.3)
LANES = 128       # lane-dense output column-group width


def _round_up(x, m):
    return (x + m - 1) // m * m


def _pick_edge_tile(n_pad, num_edges):
    """Edge-tile length: multiple of 128 in [128, 2048], one-hot [T, 2*n_pad] capped ~4 MiB."""
    budget = 4 * 1024 * 1024
    t = budget // (8 * n_pad)                       # 2*n_pad f32 columns per edge row
    t = min(t, 2048, _round_up(max(num_edges, 1), 128))
    return max(128, (t // 128) * 128)


def _vmem_limit_bytes():
    # Perf review: the 32 MiB scoped default strands >half of VMEM on v5e/v6e; 3/4 of
    # physical capacity stays safe on v7x (64 MiB).
    try:
        cap = pltpu.get_tpu_info().vmem_capacity_bytes
        return int(min(cap * 3 // 4, 96 * 1024 * 1024))
    except Exception:
        return 32 * 1024 * 1024


def edgeconv_kernel(feat_ref, wcat_ref, shift_ref, dcol_ref, scol_ref, drow_ref, inv_ref,
                    out_ref, pds_ref, *, n_pad, lanes, edge_tile):
    ei = pl.program_id(1)

    # ---- init (first edge tile of each output column group) --------------------------
    @pl.when(ei == 0)
    def _init():
        # One fused MXU matmul: [n_pad, in_dim] @ [wd_c | ws_c] -> [P_d | P_s], where
        #   P_d = x @ ((W_top - W_bot) * bn_scale) + shift    (coefficient of x_i = x[dst])
        #   P_s = x @ ( W_bot          * bn_scale)            (coefficient of x_j = x[src])
        p = jnp.dot(feat_ref[...], wcat_ref[...], preferred_element_type=jnp.float32)
        pds_ref[:n_pad, :] = p[:, :lanes] + shift_ref[...]   # bias + BN shift folded into P_d
        pds_ref[n_pad:, :] = p[:, lanes:]
        out_ref[...] = jnp.zeros_like(out_ref)

    # ---- gather via one-hot MXU matmul ------------------------------------------------
    # oh_g[e, i] = 1 if (i < n_pad and dst[e] == i) or (i >= n_pad and src[e] == i - n_pad)
    d_col = dcol_ref[...]                                          # [T, 1] int32
    s_col = scol_ref[...]                                          # [T, 1] int32
    cols = lax.broadcasted_iota(jnp.int32, (edge_tile, 2 * n_pad), 1)
    oh_g = ((cols == d_col) | (cols == s_col + n_pad)).astype(jnp.float32)

    # msg[e] = P_d[dst[e]] + P_s[src[e]]  (shift already inside P_d); LeakyReLU = max(x, 0.3x)
    msg = jnp.dot(oh_g, pds_ref[...], preferred_element_type=jnp.float32)   # [T, lanes]
    msg = jnp.maximum(msg, NEG_SLOPE * msg)

    # ---- scatter-add to destination rows via transposed one-hot MXU matmul ------------
    d_row = drow_ref[0]                                            # [1, T] int32
    rows = lax.broadcasted_iota(jnp.int32, (n_pad, edge_tile), 0)
    oh_sT = (rows == d_row).astype(jnp.float32)                    # [n_pad, T]
    out_ref[...] += jnp.dot(oh_sT, msg, preferred_element_type=jnp.float32)

    # ---- finalize: mean aggregation (precomputed inverse in-degree; isolated nodes 0) -
    @pl.when(ei == pl.num_programs(1) - 1)
    def _fin():
        out_ref[...] = out_ref[...] * inv_ref[...]


def edge_conv_layer(feature, edge_index, params, eps=1e-5):
    """feature: [N, in_dim] f32, edge_index: [2, E] i32 (row0=src j, row1=dst i) -> [N, out_dim]."""
    N, in_dim = feature.shape
    E = edge_index.shape[1]
    w = params["w"].astype(jnp.float32)                      # [2*in_dim, out_dim]
    out_dim = w.shape[1]

    # Fold BatchNorm1d (eval, running stats) + Linear bias into per-column scale / shift.
    scale = params["gamma"] / jnp.sqrt(params["running_var"] + eps)
    shift = params["b"] * scale + params["beta"] - params["running_mean"] * scale

    # W-split identity: cat([x_i, x_j - x_i]) @ W == x_i @ (W_top - W_bot) + x_j @ W_bot.
    w_top, w_bot = w[:in_dim], w[in_dim:]
    wd = (w_top - w_bot) * scale[None, :]                    # coefficient of x_i (dst)
    ws = w_bot * scale[None, :]                              # coefficient of x_j (src)

    out_pad = _round_up(out_dim, LANES)
    n_cg = out_pad // LANES
    n_pad = _round_up(N + 1, 8)                              # +1 dummy row absorbs padded edges
    dummy = n_pad - 1

    edge_tile = _pick_edge_tile(n_pad, E)
    e_pad = _round_up(max(E, 1), edge_tile)
    n_et = e_pad // edge_tile

    feat_p = jnp.zeros((n_pad, in_dim), jnp.float32).at[:N].set(feature.astype(jnp.float32))

    # Per output column group c, block c of wcat is [wd_c | ws_c] -> one fused init matmul.
    wd_p = jnp.zeros((in_dim, out_pad), jnp.float32).at[:, :out_dim].set(wd)
    ws_p = jnp.zeros((in_dim, out_pad), jnp.float32).at[:, :out_dim].set(ws)
    wcat = jnp.stack([wd_p.reshape(in_dim, n_cg, LANES),
                      ws_p.reshape(in_dim, n_cg, LANES)], axis=2)
    wcat = wcat.reshape(in_dim, n_cg * 2 * LANES)
    shift_p = jnp.zeros((1, out_pad), jnp.float32).at[0, :out_dim].set(shift)

    # Edge indices: clamp (safety), pad with the dummy node, and provide the two layouts
    # the kernel needs (sublane column for the gather one-hot, lane row for the scatter).
    src = jnp.clip(edge_index[0].astype(jnp.int32), 0, n_pad - 1)
    dst = jnp.clip(edge_index[1].astype(jnp.int32), 0, n_pad - 1)
    src_p = jnp.full((e_pad,), dummy, jnp.int32).at[:E].set(src)
    dst_p = jnp.full((e_pad,), dummy, jnp.int32).at[:E].set(dst)
    src_col = src_p.reshape(e_pad, 1)
    dst_col = dst_p.reshape(e_pad, 1)
    dst_row = dst_p.reshape(n_et, 1, edge_tile)

    # Inverse in-degree precomputed once in XLA: no per-edge degree RMW inside the kernel.
    cnt = jax.ops.segment_sum(jnp.ones((E,), jnp.float32), dst, num_segments=n_pad)
    inv_deg = jnp.where(cnt > 0.0, 1.0 / jnp.maximum(cnt, 1.0), 0.0).reshape(n_pad, 1)

    grid = (n_cg, n_et)

    flops = 4 * n_pad * in_dim * out_pad + 6 * e_pad * n_pad * out_pad
    bytes_accessed = 4 * (n_pad * in_dim + 2 * in_dim * out_pad + out_pad
                          + 3 * e_pad + n_pad + n_pad * out_pad)

    out_padded = pl.pallas_call(
        functools.partial(edgeconv_kernel, n_pad=n_pad, lanes=LANES, edge_tile=edge_tile),
        out_shape=jax.ShapeDtypeStruct((n_pad, out_pad), jnp.float32),
        grid_spec=pltpu.PrefetchScalarGridSpec(
            num_scalar_prefetch=0,
            grid=grid,
            in_specs=[
                pl.BlockSpec((n_pad, in_dim), lambda c, ei: (0, 0)),        # features (resident)
                pl.BlockSpec((in_dim, 2 * LANES), lambda c, ei: (0, c)),    # [wd_c | ws_c]
                pl.BlockSpec((1, LANES), lambda c, ei: (0, c)),             # shift_c
                pl.BlockSpec((edge_tile, 1), lambda c, ei: (ei, 0)),        # dst (column layout)
                pl.BlockSpec((edge_tile, 1), lambda c, ei: (ei, 0)),        # src (column layout)
                pl.BlockSpec((1, 1, edge_tile), lambda c, ei: (ei, 0, 0)),  # dst (row layout)
                pl.BlockSpec((n_pad, 1), lambda c, ei: (0, 0)),             # inverse in-degree
            ],
            out_specs=pl.BlockSpec((n_pad, LANES), lambda c, ei: (0, c)),
            scratch_shapes=[pltpu.VMEM((2 * n_pad, LANES), jnp.float32)],   # [P_d ; P_s]
        ),
        compiler_params=pltpu.CompilerParams(
            dimension_semantics=("parallel", "arbitrary"),
            vmem_limit_bytes=_vmem_limit_bytes(),
        ),
        cost_estimate=pl.CostEstimate(flops=int(flops), transcendentals=0,
                                      bytes_accessed=int(bytes_accessed)),
    )(feat_p, wcat, shift_p, dst_col, src_col, dst_row, inv_deg)

    return out_padded[:N, :out_dim]


def _reference(feature, edge_index, params, eps=1e-5):
    """Pure-JAX eval-mode EdgeConv (mean aggregation) for a correctness check."""
    src, dst = edge_index[0], edge_index[1]
    n = feature.shape[0]
    x_i, x_j = feature[dst], feature[src]
    z = jnp.concatenate([x_i, x_j - x_i], axis=-1) @ params["w"] + params["b"]
    scale = params["gamma"] / jnp.sqrt(params["running_var"] + eps)
    z = (z - params["running_mean"]) * scale + params["beta"]
    z = jnp.where(z >= 0, z, NEG_SLOPE * z)
    num = jax.ops.segment_sum(z, dst, num_segments=n)
    cnt = jax.ops.segment_sum(jnp.ones((dst.shape[0],), jnp.float32), dst, num_segments=n)
    return jnp.where(cnt[:, None] > 0, num / jnp.maximum(cnt[:, None], 1.0), 0.0)


if __name__ == "__main__":
    # Small deterministic example consistent with the module's forward.
    N, in_dim, out_dim, E = 16, 8, 32, 64

    key = jax.random.PRNGKey(0)
    k_feat, k_src, k_dst, k_w, k_b, k_g, k_be, k_rm, k_rv = jax.random.split(key, 9)

    feature = jax.random.normal(k_feat, (N, in_dim), dtype=jnp.float32)
    edge_index = jnp.stack(
        [jax.random.randint(k_src, (E,), 0, N, dtype=jnp.int32),
         jax.random.randint(k_dst, (E,), 0, N, dtype=jnp.int32)], axis=0)  # [2, E]

    # Parameter shapes from Linear(2*in_dim, out_dim) + BatchNorm1d(out_dim) (eval mode).
    params = {
        "w": jax.random.normal(k_w, (2 * in_dim, out_dim), dtype=jnp.float32) * 0.1,
        "b": jax.random.normal(k_b, (out_dim,), dtype=jnp.float32) * 0.1,
        "gamma": 1.0 + 0.1 * jax.random.normal(k_g, (out_dim,), dtype=jnp.float32),
        "beta": 0.1 * jax.random.normal(k_be, (out_dim,), dtype=jnp.float32),
        "running_mean": 0.1 * jax.random.normal(k_rm, (out_dim,), dtype=jnp.float32),
        "running_var": jnp.abs(1.0 + 0.1 * jax.random.normal(k_rv, (out_dim,),
                                                             dtype=jnp.float32)),
    }

    h = edge_conv_layer(feature, edge_index, params)
    jax.block_until_ready(h)
    assert h.shape == (N, out_dim) and h.dtype == jnp.float32

    h_ref = _reference(feature, edge_index, params)
    # MXU f32 matmuls may execute in bf16 passes; 5e-3 comfortably covers that rounding.
    assert jnp.allclose(h, h_ref, atol=5e-3, rtol=5e-3), "mismatch vs pure-JAX reference"

    print("KERNEL_OK")
</pallas_src>

<mosaic_0001>
module attributes {stable_mosaic.version = 11 : i64} {
  func.func @edgeconv_kernel(%arg0: i32, %arg1: i32, %arg2: memref<24x8xf32, #tpu.memory_space<vmem>>, %arg3: memref<8x256xf32, #tpu.memory_space<vmem>>, %arg4: memref<1x128xf32, #tpu.memory_space<vmem>>, %arg5: memref<128x1xi32, #tpu.memory_space<vmem>>, %arg6: memref<128x1xi32, #tpu.memory_space<vmem>>, %arg7: memref<1x1x128xi32, #tpu.memory_space<vmem>>, %arg8: memref<24x1xf32, #tpu.memory_space<vmem>>, %arg9: memref<24x128xf32, #tpu.memory_space<vmem>>, %arg10: memref<48x128xf32, #tpu.memory_space<vmem>>) attributes {dimension_semantics = [#tpu.dimension_semantics<parallel>, #tpu.dimension_semantics<arbitrary>], iteration_bounds = array<i64: 1, 1>, scalar_prefetch = 0 : i64, scratch_operands = 1 : i64, tpu.core_type = #tpu.core_type<tc>, window_params = [{pipeline_mode = #tpu.pipeline_mode<synchronous>, transform_indices = @transform_0, window_bounds = array<i64: 24, 8>}, {transform_indices = @transform_1, window_bounds = array<i64: 8, 256>}, {transform_indices = @transform_2, window_bounds = array<i64: 1, 128>}, {transform_indices = @transform_3, window_bounds = array<i64: 128, 1>}, {transform_indices = @transform_4, window_bounds = array<i64: 128, 1>}, {transform_indices = @transform_5, window_bounds = array<i64: 1, 1, 128>}, {pipeline_mode = #tpu.pipeline_mode<synchronous>, transform_indices = @transform_6, window_bounds = array<i64: 24, 1>}, {transform_indices = @transform_7, window_bounds = array<i64: 24, 128>}]} {
    %c0_i32 = arith.constant 0 : i32
    %0 = arith.cmpi eq, %arg1, %c0_i32 : i32
    %1 = arith.extui %0 : i1 to i32
    %c0_i32_0 = arith.constant 0 : i32
    %2 = arith.cmpi ne, %1, %c0_i32_0 : i32
    scf.if %2 {
      %c0_17 = arith.constant 0 : index
      %c0_18 = arith.constant 0 : index
      %34 = vector.load %arg2[%c0_17, %c0_18] : memref<24x8xf32, #tpu.memory_space<vmem>>, vector<24x8xf32>
      %c0_19 = arith.constant 0 : index
      %c0_20 = arith.constant 0 : index
      %35 = vector.load %arg3[%c0_19, %c0_20] : memref<8x256xf32, #tpu.memory_space<vmem>>, vector<8x256xf32>
      %cst_21 = arith.constant dense<0.000000e+00> : vector<24x256xf32>
      %36 = tpu.matmul %34, %35, %cst_21 {dimension_numbers = #tpu.dot_dimension_numbers<[1], [0], [0], [1], [0, 0, 1, 1], [], []>} : vector<24x8xf32>, vector<8x256xf32>, vector<24x256xf32> -> vector<24x256xf32>
      %37 = vector.extract_strided_slice %36 {offsets = [0, 0], sizes = [24, 128], strides = [1, 1]} : vector<24x256xf32> to vector<24x128xf32>
      %c0_22 = arith.constant 0 : index
      %c0_23 = arith.constant 0 : index
      %38 = vector.load %arg4[%c0_22, %c0_23] : memref<1x128xf32, #tpu.memory_space<vmem>>, vector<1x128xf32>
      %39 = vector.broadcast %38 : vector<1x128xf32> to vector<24x128xf32>
      %40 = arith.addf %37, %39 : vector<24x128xf32>
      %c0_24 = arith.constant 0 : index
      %c0_25 = arith.constant 0 : index
      %41 = vector.load %arg10[%c0_24, %c0_25] : memref<48x128xf32, #tpu.memory_space<vmem>>, vector<24x128xf32>
      tpu.vector_store %arg10[%c0_24, %c0_25], %40 {strides = array<i32>} : memref<48x128xf32, #tpu.memory_space<vmem>>, vector<24x128xf32>,
      %42 = vector.extract_strided_slice %36 {offsets = [0, 128], sizes = [24, 128], strides = [1, 1]} : vector<24x256xf32> to vector<24x128xf32>
      %c24 = arith.constant 24 : index
      %c0_26 = arith.constant 0 : index
      %43 = vector.load %arg10[%c24, %c0_26] : memref<48x128xf32, #tpu.memory_space<vmem>>, vector<24x128xf32>
      tpu.vector_store %arg10[%c24, %c0_26], %42 {strides = array<i32>} : memref<48x128xf32, #tpu.memory_space<vmem>>, vector<24x128xf32>,
      %cst_27 = arith.constant 0.000000e+00 : f32
      %44 = vector.broadcast %cst_27 : f32 to vector<24x128xf32>
      %c0_28 = arith.constant 0 : index
      %c0_29 = arith.constant 0 : index
      %45 = vector.load %arg9[%c0_28, %c0_29] : memref<24x128xf32, #tpu.memory_space<vmem>>, vector<24x128xf32>
      tpu.vector_store %arg9[%c0_28, %c0_29], %44 {strides = array<i32>} : memref<24x128xf32, #tpu.memory_space<vmem>>, vector<24x128xf32>,
    } else {
    }
    %c0 = arith.constant 0 : index
    %c0_1 = arith.constant 0 : index
    %3 = vector.load %arg5[%c0, %c0_1] : memref<128x1xi32, #tpu.memory_space<vmem>>, vector<128x1xi32>
    %c0_2 = arith.constant 0 : index
    %c0_3 = arith.constant 0 : index
    %4 = vector.load %arg6[%c0_2, %c0_3] : memref<128x1xi32, #tpu.memory_space<vmem>>, vector<128x1xi32>
    %5 = tpu.iota {dimensions = array<i32: 1>} : vector<128x48xi32>
    %6 = vector.broadcast %3 : vector<128x1xi32> to vector<128x48xi32>
    %7 = arith.cmpi eq, %5, %6 : vector<128x48xi32>
    %c24_i32 = arith.constant 24 : i32
    %8 = vector.broadcast %c24_i32 : i32 to vector<128x1xi32>
    %9 = arith.addi %4, %8 : vector<128x1xi32>
    %10 = vector.broadcast %9 : vector<128x1xi32> to vector<128x48xi32>
    %11 = arith.cmpi eq, %5, %10 : vector<128x48xi32>
    %12 = arith.ori %7, %11 : vector<128x48xi1>
    %13 = arith.extui %12 : vector<128x48xi1> to vector<128x48xi32>
    %14 = arith.sitofp %13 : vector<128x48xi32> to vector<128x48xf32>
    %c0_4 = arith.constant 0 : index
    %c0_5 = arith.constant 0 : index
    %15 = vector.load %arg10[%c0_4, %c0_5] : memref<48x128xf32, #tpu.memory_space<vmem>>, vector<48x128xf32>
    %cst = arith.constant dense<0.000000e+00> : vector<128x128xf32>
    %16 = tpu.matmul %14, %15, %cst {dimension_numbers = #tpu.dot_dimension_numbers<[1], [0], [0], [1], [0, 0, 1, 1], [], []>} : vector<128x48xf32>, vector<48x128xf32>, vector<128x128xf32> -> vector<128x128xf32>
    %cst_6 = arith.constant 3.000000e-01 : f32
    %17 = vector.broadcast %cst_6 : f32 to vector<128x128xf32>
    %18 = arith.mulf %17, %16 : vector<128x128xf32>
    %19 = arith.maximumf %16, %18 : vector<128x128xf32>
    %c0_7 = arith.constant 0 : index
    %c0_8 = arith.constant 0 : index
    %c0_9 = arith.constant 0 : index
    %20 = vector.load %arg7[%c0_7, %c0_8, %c0_9] : memref<1x1x128xi32, #tpu.memory_space<vmem>>, vector<1x1x128xi32>
    %21 = vector.shape_cast %20 : vector<1x1x128xi32> to vector<1x128xi32>
    %22 = tpu.iota {dimensions = array<i32: 0>} : vector<24x128xi32>
    %23 = vector.broadcast %21 : vector<1x128xi32> to vector<24x128xi32>
    %24 = arith.cmpi eq, %22, %23 : vector<24x128xi32>
    %25 = arith.extui %24 : vector<24x128xi1> to vector<24x128xi32>
    %26 = arith.sitofp %25 : vector<24x128xi32> to vector<24x128xf32>
    %c0_10 = arith.constant 0 : index
    %c0_11 = arith.constant 0 : index
    %27 = vector.load %arg9[%c0_10, %c0_11] : memref<24x128xf32, #tpu.memory_space<vmem>>, vector<24x128xf32>
    %cst_12 = arith.constant dense<0.000000e+00> : vector<24x128xf32>
    %28 = tpu.matmul %26, %19, %cst_12 {dimension_numbers = #tpu.dot_dimension_numbers<[1], [0], [0], [1], [0, 0, 1, 1], [], []>} : vector<24x128xf32>, vector<128x128xf32>, vector<24x128xf32> -> vector<24x128xf32>
    %29 = arith.addf %27, %28 : vector<24x128xf32>
    %c0_13 = arith.constant 0 : index
    %c0_14 = arith.constant 0 : index
    %30 = vector.load %arg9[%c0_13, %c0_14] : memref<24x128xf32, #tpu.memory_space<vmem>>, vector<24x128xf32>
    tpu.vector_store %arg9[%c0_13, %c0_14], %29 {strides = array<i32>} : memref<24x128xf32, #tpu.memory_space<vmem>>, vector<24x128xf32>,
    %c0_i32_15 = arith.constant 0 : i32
    %31 = arith.cmpi eq, %arg1, %c0_i32_15 : i32
    %32 = arith.extui %31 : i1 to i32
    %c0_i32_16 = arith.constant 0 : i32
    %33 = arith.cmpi ne, %32, %c0_i32_16 : i32
    scf.if %33 {
      %c0_17 = arith.constant 0 : index
      %c0_18 = arith.constant 0 : index
      %34 = vector.load %arg9[%c0_17, %c0_18] : memref<24x128xf32, #tpu.memory_space<vmem>>, vector<24x128xf32>
      %c0_19 = arith.constant 0 : index
      %c0_20 = arith.constant 0 : index
      %35 = vector.load %arg8[%c0_19, %c0_20] : memref<24x1xf32, #tpu.memory_space<vmem>>, vector<24x1xf32>
      %36 = vector.broadcast %35 : vector<24x1xf32> to vector<24x128xf32>
      %37 = arith.mulf %34, %36 : vector<24x128xf32>
      %c0_21 = arith.constant 0 : index
      %c0_22 = arith.constant 0 : index
      %38 = vector.load %arg9[%c0_21, %c0_22] : memref<24x128xf32, #tpu.memory_space<vmem>>, vector<24x128xf32>
      tpu.vector_store %arg9[%c0_21, %c0_22], %37 {strides = array<i32>} : memref<24x128xf32, #tpu.memory_space<vmem>>, vector<24x128xf32>,
    } else {
    }
    return
  }
  func.func @transform_0(%arg0: i32, %arg1: i32) -> (i32, i32) {
    %c0_i32 = arith.constant 0 : i32
    %c0_i32_0 = arith.constant 0 : i32
    %c0_i32_1 = arith.constant 0 : i32
    return %c0_i32, %c0_i32_0 : i32, i32
  }
  func.func @transform_1(%arg0: i32, %arg1: i32) -> (i32, i32) {
    %c0_i32 = arith.constant 0 : i32
    %c0_i32_0 = arith.constant 0 : i32
    return %c0_i32, %arg0 : i32, i32
  }
  func.func @transform_2(%arg0: i32, %arg1: i32) -> (i32, i32) {
    %c0_i32 = arith.constant 0 : i32
    %c0_i32_0 = arith.constant 0 : i32
    return %c0_i32, %arg0 : i32, i32
  }
  func.func @transform_3(%arg0: i32, %arg1: i32) -> (i32, i32) {
    %c0_i32 = arith.constant 0 : i32
    %c0_i32_0 = arith.constant 0 : i32
    return %arg1, %c0_i32 : i32, i32
  }
  func.func @transform_4(%arg0: i32, %arg1: i32) -> (i32, i32) {
    %c0_i32 = arith.constant 0 : i32
    %c0_i32_0 = arith.constant 0 : i32
    return %arg1, %c0_i32 : i32, i32
  }
  func.func @transform_5(%arg0: i32, %arg1: i32) -> (i32, i32, i32) {
    %c0_i32 = arith.constant 0 : i32
    %c0_i32_0 = arith.constant 0 : i32
    %c0_i32_1 = arith.constant 0 : i32
    return %arg1, %c0_i32, %c0_i32_0 : i32, i32, i32
  }
  func.func @transform_6(%arg0: i32, %arg1: i32) -> (i32, i32) {
    %c0_i32 = arith.constant 0 : i32
    %c0_i32_0 = arith.constant 0 : i32
    %c0_i32_1 = arith.constant 0 : i32
    return %c0_i32, %c0_i32_0 : i32, i32
  }
  func.func @transform_7(%arg0: i32, %arg1: i32) -> (i32, i32) {
    %c0_i32 = arith.constant 0 : i32
    %c0_i32_0 = arith.constant 0 : i32
    return %c0_i32, %arg0 : i32, i32
  }
}

</mosaic_0001>

<llo_original>
// kernel: tpu_custom_call.1
$region0: #{tpu_custom_call.1}
  #allocation0 [shape = 'u32[]', space=smem, size = 0x4, offset = 0x4, fixed_abs, tag = 'smem constant byte address 0x4 - core index']
  #allocation1 [shape = 'u32[144,128]{1,0:T(1,128)}', space=vmem, size = 0x12000, scoped, tag = 'internal scratch']
  #allocation2 [shape = 'f32[48,128]{1,0:T(8,128)}', space=vmem, size = 0x6000, scoped, tag = 'scratch operand']
  %s0 = inlined_call_operand.vmem [shape: f32[24,8], index: 0, kind: input, shape index: {}]
  %s1 = inlined_call_operand.vmem [shape: f32[8,256], index: 1, kind: input, shape index: {}]
  %s2 = inlined_call_operand.vmem [shape: f32[1,128], index: 2, kind: input, shape index: {}]
  %s3 = inlined_call_operand.vmem [shape: s32[128,1], index: 3, kind: input, shape index: {}]
  %s4 = inlined_call_operand.vmem [shape: s32[128,1], index: 4, kind: input, shape index: {}]
  %s5 = inlined_call_operand.vmem [shape: s32[1,1,128], index: 5, kind: input, shape index: {}]
  %s6 = inlined_call_operand.vmem [shape: f32[24,1], index: 6, kind: input, shape index: {}]
  %s7 = inlined_call_operand.hbm [shape: f32[24,128], index: 7, kind: output, shape index: {}]
  %s8 = sld [smem:[#allocation0]]
  $region46: #{tpu_custom_call.1} parent=0
    _
  %s10 = ssub.s32 1, %s8
  %s11 = scalar_select 0, %s10, %s8
  $region1: #{tpu_custom_call.1} parent=0
    #allocation3 [shape = 'u8[12288]{0}', space=vmem, size = 0x3000, scoped, tag = 'output window, operand 0, single buffered']
    #allocation4 [shape = 's32[1]{0}', space=sflag, size = 0x4, scoped, tag = 'scoped memory for tpu_custom_call.1']
    %12 = vsyncpa [#allocation4], 0
    // Predicated region
    $region2: #{tpu_custom_call.1} parent=1 // pred_check
      _
    $region3: #{tpu_custom_call.1} parent=1 // pred_check_branch
      %14 = sbr.rel (0) target = $region5
    $region4: #{tpu_custom_call.1} parent=1 // pred_region
      _
    $region5: #{tpu_custom_call.1} parent=1 // pred_fallthru
      _
    // Predicated region
    $region6: #{tpu_custom_call.1} parent=1 // pred_check
      _
    $region7: #{tpu_custom_call.1} parent=1 // pred_check_branch
      %16 = sbr.rel (0) target = $region9
    $region8: #{tpu_custom_call.1} parent=1 // pred_region
      _
    $region9: #{tpu_custom_call.1} parent=1 // pred_fallthru
      _
    // Predicated region
    $region10: #{tpu_custom_call.1} parent=1 // pred_check
      _
    $region11: #{tpu_custom_call.1} parent=1 // pred_check_branch
      %18 = sbr.rel (0) target = $region13
    $region12: #{tpu_custom_call.1} parent=1 // pred_region
      _
    $region13: #{tpu_custom_call.1} parent=1 // pred_fallthru
      _
    // Predicated region
    $region14: #{tpu_custom_call.1} parent=1 // pred_check
      _
    $region15: #{tpu_custom_call.1} parent=1 // pred_check_branch
      %20 = sbr.rel (0) target = $region17
    $region16: #{tpu_custom_call.1} parent=1 // pred_region
      _
    $region17: #{tpu_custom_call.1} parent=1 // pred_fallthru
      _
    // Predicated region
    $region18: #{tpu_custom_call.1} parent=1 // pred_check
      _
    $region19: #{tpu_custom_call.1} parent=1 // pred_check_branch
      %22 = sbr.rel (0) target = $region21
    $region20: #{tpu_custom_call.1} parent=1 // pred_region
      _
    $region21: #{tpu_custom_call.1} parent=1 // pred_fallthru
      _
    // Predicated region
    $region22: #{tpu_custom_call.1} parent=1 // pred_check
      _
    $region23: #{tpu_custom_call.1} parent=1 // pred_check_branch
      %24 = sbr.rel (0) target = $region25
    $region24: #{tpu_custom_call.1} parent=1 // pred_region
      _
    $region25: #{tpu_custom_call.1} parent=1 // pred_fallthru
      _
    // Predicated region
    $region26: #{tpu_custom_call.1} parent=1 // pred_check
      _
    $region27: #{tpu_custom_call.1} parent=1 // pred_check_branch
      %26 = sbr.rel (0) target = $region29
    $region28: #{tpu_custom_call.1} parent=1 // pred_region
      _
    $region29: #{tpu_custom_call.1} parent=1 // pred_fallthru
      _
    %p27 = scmp.eq.s32.totalorder 0, 0
    // Predicated region
    $region30: #{tpu_custom_call.1} parent=1 // pred_check
      %p28 = pneg %p27
    $region31: #{tpu_custom_call.1} parent=1 // pred_check_branch
      %30 = sbr.rel (%p28) target = $region33
    $region32: #{tpu_custom_call.1} parent=1 // pred_region
      %v31 = vld [vmem:[%s0] sm:$0xff]
      %v32 = vld [vmem:[%s0 + $0x8] sm:$0xff]
      %v33 = vld [vmem:[%s0 + $0x10] sm:$0xff]
      %v34 = vld [vmem:[%s1] sm:$0xff]
      %v35 = vld [vmem:[%s1 + $0x8] sm:$0xff]
      %vm36 = vcmask 64512
      %v38 = vsel %vm36, %v31, 0
      %v41 = vsel %vm36, %v32, 0
      %v44 = vsel %vm36, %v33, 0
      %46 = vmatprep.subr.mxu0 0.0
      %47 = vmatpush1.msra.mxu0 0.0
      %48 = vmatprep.subr.mxu0 0.0
      %49 = vmatpush1.msra.mxu0 0.0
      %50 = vmatprep.subr.mxu0 0.0
      %51 = vmatpush1.msra.mxu0 0.0
      %52 = vmatprep.subr.mxu0 0.0
      %53 = vmatpush1.msra.mxu0 0.0
      %54 = vmatprep.subr.mxu0 0.0
      %55 = vmatpush1.msra.mxu0 0.0
      %56 = vmatprep.subr.mxu0 0.0
      %57 = vmatpush1.msra.mxu0 0.0
      %58 = vmatprep.subr.mxu0 0.0
      %59 = vmatpush1.msra.mxu0 0.0
      %60 = vmatprep.subr.mxu0 0.0
      %61 = vmatpush1.msra.mxu0 0.0
      %62 = vmatprep.subr.mxu0 0.0
      %63 = vmatpush1.msra.mxu0 0.0
      %64 = vmatprep.subr.mxu0 0.0
      %65 = vmatpush1.msra.mxu0 0.0
      %66 = vmatprep.subr.mxu0 0.0
      %67 = vmatpush1.msra.mxu0 0.0
      %68 = vmatprep.subr.mxu0 0.0
      %69 = vmatpush1.msra.mxu0 0.0
      %70 = vmatprep.subr.mxu0 0.0
      %71 = vmatpush1.msra.mxu0 0.0
      %72 = vmatprep.subr.mxu0 0.0
      %73 = vmatpush1.msra.mxu0 0.0
      %74 = vmatprep.subr.mxu0 0.0
      %75 = vmatpush1.msra.mxu0 0.0
      %76 = vmatprep.subr.mxu0 %v35
      %77 = vmatpush1.msra.mxu0 %v34
      %78 = vmatprep.subr.mxu0 0.0
      %79 = vmatpush2.msra.mxu0 0.0
      %80 = vmatprep.subr.mxu0 0.0
      %81 = vmatpush2.msra.mxu0 0.0
      %82 = vmatprep.subr.mxu0 0.0
      %83 = vmatpush2.msra.mxu0 0.0
      %84 = vmatprep.subr.mxu0 0.0
      %85 = vmatpush2.msra.mxu0 0.0
      %86 = vmatprep.subr.mxu0 0.0
      %87 = vmatpush2.msra.mxu0 0.0
      %88 = vmatprep.subr.mxu0 0.0
      %89 = vmatpush2.msra.mxu0 0.0
      %90 = vmatprep.subr.mxu0 0.0
      %91 = vmatpush2.msra.mxu0 0.0
      %92 = vmatprep.subr.mxu0 0.0
      %93 = vmatpush2.msra.mxu0 0.0
      %94 = vmatprep.subr.mxu0 0.0
      %95 = vmatpush2.msra.mxu0 0.0
      %96 = vmatprep.subr.mxu0 0.0
      %97 = vmatpush2.msra.mxu0 0.0
      %98 = vmatprep.subr.mxu0 0.0
      %99 = vmatpush2.msra.mxu0 0.0
      %100 = vmatprep.subr.mxu0 0.0
      %101 = vmatpush2.msra.mxu0 0.0
      %102 = vmatprep.subr.mxu0 0.0
      %103 = vmatpush2.msra.mxu0 0.0
      %104 = vmatprep.subr.mxu0 0.0
      %105 = vmatpush2.msra.mxu0 0.0
      %106 = vmatprep.subr.mxu0 0.0
      %107 = vmatpush2.msra.mxu0 0.0
      %108 = vmatprep.subr.mxu0 0.0
      %109 = vmatpush2.msra.mxu0 0.0
      %110 = vmatprep.mubr.f32.mxu0 0.0
      %111 = vmatmul.mubr.f32.gmra.mxu0 %v38
      %v112 = vpop.f32.mrf.mxu0
      %v113 = vadd.f32 0.0, %v112
      %v114 = vpop.f32.mrf.mxu0
      %v115 = vadd.f32 0.0, %v114
      %116 = vmatprep.mubr.f32.mxu0 0.0
      %117 = vmatmul.mubr.f32.gmra.mxu0 %v41
      %v118 = vpop.f32.mrf.mxu0
      %v119 = vadd.f32 0.0, %v118
      %v120 = vpop.f32.mrf.mxu0
      %v121 = vadd.f32 0.0, %v120
      %122 = vmatprep.mubr.f32.mxu0 0.0
      %123 = vmatmul.mubr.f32.gmra.mxu0 %v44
      %v124 = vpop.f32.mrf.mxu0
      %v125 = vadd.f32 0.0, %v124
      %v126 = vpop.f32.mrf.mxu0
      %v127 = vadd.f32 0.0, %v126
      %128 = vdwg.mxu0
      %v129 = vld [vmem:[%s2] sm:$0x1]
      %v131 = vlaneseq
      %v132 = vshrl.u32 %v131, 7
      %v133 = vsub.s32 0, %v132
      %v134 = vrot.slane %v129, %v133
      %v136 = vadd.f32 %v113, %v134
      %v137 = vadd.f32 %v119, %v134
      %v138 = vadd.f32 %v125, %v134
      %139 = vst [vmem:[#allocation2] sm:$0xff] %v136
      %140 = vst [vmem:[#allocation2 + $0x8] sm:$0xff] %v137
      %141 = vst [vmem:[#allocation2 + $0x10] sm:$0xff] %v138
      %142 = vst [vmem:[#allocation2 + $0x18] sm:$0xff] %v115
      %143 = vst [vmem:[#allocation2 + $0x20] sm:$0xff] %v121
      %144 = vst [vmem:[#allocation2 + $0x28] sm:$0xff] %v127
      %145 = vst [vmem:[#allocation3] sm:$0xff] 0.0
      %146 = vst [vmem:[#allocation3 + $0x8] sm:$0xff] 0.0
      %147 = vst [vmem:[#allocation3 + $0x10] sm:$0xff] 0.0
    $region33: #{tpu_custom_call.1} parent=1 // pred_fallthru
      _
    %v148 = vld [vmem:[%s3] sm:$0xff]
    %v149 = vld [vmem:[%s3 + $0x8] sm:$0xff]
    %v150 = vld [vmem:[%s3 + $0x10] sm:$0xff]
    %v151 = vld [vmem:[%s3 + $0x18] sm:$0xff]
    %v152 = vld [vmem:[%s3 + $0x20] sm:$0xff]
    %v153 = vld [vmem:[%s3 + $0x28] sm:$0xff]
    %v154 = vld [vmem:[%s3 + $0x30] sm:$0xff]
    %v155 = vld [vmem:[%s3 + $0x38] sm:$0xff]
    %v156 = vld [vmem:[%s3 + $0x40] sm:$0xff]
    %v157 = vld [vmem:[%s3 + $0x48] sm:$0xff]
    %v158 = vld [vmem:[%s3 + $0x50] sm:$0xff]
    %v159 = vld [vmem:[%s3 + $0x58] sm:$0xff]
    %v160 = vld [vmem:[%s3 + $0x60] sm:$0xff]
    %v161 = vld [vmem:[%s3 + $0x68] sm:$0xff]
    %v162 = vld [vmem:[%s3 + $0x70] sm:$0xff]
    %v163 = vld [vmem:[%s3 + $0x78] sm:$0xff]
    %v164 = vld [vmem:[%s4] sm:$0xff]
    %v165 = vld [vmem:[%s4 + $0x8] sm:$0xff]
    %v166 = vld [vmem:[%s4 + $0x10] sm:$0xff]
    %v167 = vld [vmem:[%s4 + $0x18] sm:$0xff]
    %v168 = vld [vmem:[%s4 + $0x20] sm:$0xff]
    %v169 = vld [vmem:[%s4 + $0x28] sm:$0xff]
    %v170 = vld [vmem:[%s4 + $0x30] sm:$0xff]
    %v171 = vld [vmem:[%s4 + $0x38] sm:$0xff]
    %v172 = vld [vmem:[%s4 + $0x40] sm:$0xff]
    %v173 = vld [vmem:[%s4 + $0x48] sm:$0xff]
    %v174 = vld [vmem:[%s4 + $0x50] sm:$0xff]
    %v175 = vld [vmem:[%s4 + $0x58] sm:$0xff]
    %v176 = vld [vmem:[%s4 + $0x60] sm:$0xff]
    %v177 = vld [vmem:[%s4 + $0x68] sm:$0xff]
    %v178 = vld [vmem:[%s4 + $0x70] sm:$0xff]
    %v179 = vld [vmem:[%s4 + $0x78] sm:$0xff]
    %v180 = vlaneseq
    %v181 = vand.u32 %v180, 127
    %182 = vset.pattern.permute.xlu0 0
    %183 = vperm.xlu0 %182, %v148
    %v184 = vpop.permute.xlu0 %183
    %185 = vset.pattern.permute.xlu0 0
    %186 = vperm.xlu0 %185, %v149
    %v187 = vpop.permute.xlu0 %186
    %188 = vset.pattern.permute.xlu0 0
    %189 = vperm.xlu0 %188, %v150
    %v190 = vpop.permute.xlu0 %189
    %191 = vset.pattern.permute.xlu0 0
    %192 = vperm.xlu0 %191, %v151
    %v193 = vpop.permute.xlu0 %192
    %194 = vset.pattern.permute.xlu0 0
    %195 = vperm.xlu0 %194, %v152
    %v196 = vpop.permute.xlu0 %195
    %197 = vset.pattern.permute.xlu0 0
    %198 = vperm.xlu0 %197, %v153
    %v199 = vpop.permute.xlu0 %198
    %200 = vset.pattern.permute.xlu0 0
    %201 = vperm.xlu0 %200, %v154
    %v202 = vpop.permute.xlu0 %201
    %203 = vset.pattern.permute.xlu0 0
    %204 = vperm.xlu0 %203, %v155
    %v205 = vpop.permute.xlu0 %204
    %206 = vset.pattern.permute.xlu0 0
    %207 = vperm.xlu0 %206, %v156
    %v208 = vpop.permute.xlu0 %207
    %209 = vset.pattern.permute.xlu0 0
    %210 = vperm.xlu0 %209, %v157
    %v211 = vpop.permute.xlu0 %210
    %212 = vset.pattern.permute.xlu0 0
    %213 = vperm.xlu0 %212, %v158
    %v214 = vpop.permute.xlu0 %213
    %215 = vset.pattern.permute.xlu0 0
    %216 = vperm.xlu0 %215, %v159
    %v217 = vpop.permute.xlu0 %216
    %218 = vset.pattern.permute.xlu0 0
    %219 = vperm.xlu0 %218, %v160
    %v220 = vpop.permute.xlu0 %219
    %221 = vset.pattern.permute.xlu0 0
    %222 = vperm.xlu0 %221, %v161
    %v223 = vpop.permute.xlu0 %222
    %224 = vset.pattern.permute.xlu0 0
    %225 = vperm.xlu0 %224, %v162
    %v226 = vpop.permute.xlu0 %225
    %227 = vset.pattern.permute.xlu0 0
    %228 = vperm.xlu0 %227, %v163
    %v229 = vpop.permute.xlu0 %228
    %vm230 = vcmp.eq.s32.totalorder %v181, %v184
    %vm231 = vcmp.eq.s32.totalorder %v181, %v187
    %vm232 = vcmp.eq.s32.totalorder %v181, %v190
    %vm233 = vcmp.eq.s32.totalorder %v181, %v193
    %vm234 = vcmp.eq.s32.totalorder %v181, %v196
    %vm235 = vcmp.eq.s32.totalorder %v181, %v199
    %vm236 = vcmp.eq.s32.totalorder %v181, %v202
    %vm237 = vcmp.eq.s32.totalorder %v181, %v205
    %vm238 = vcmp.eq.s32.totalorder %v181, %v208
    %vm239 = vcmp.eq.s32.totalorder %v181, %v211
    %vm240 = vcmp.eq.s32.totalorder %v181, %v214
    %vm241 = vcmp.eq.s32.totalorder %v181, %v217
    %vm242 = vcmp.eq.s32.totalorder %v181, %v220
    %vm243 = vcmp.eq.s32.totalorder %v181, %v223
    %vm244 = vcmp.eq.s32.totalorder %v181, %v226
    %vm245 = vcmp.eq.s32.totalorder %v181, %v229
    %v246 = vadd.s32 %v164, 24
    %v247 = vadd.s32 %v165, 24
    %v248 = vadd.s32 %v166, 24
    %v249 = vadd.s32 %v167, 24
    %v250 = vadd.s32 %v168, 24
    %v251 = vadd.s32 %v169, 24
    %v252 = vadd.s32 %v170, 24
    %v253 = vadd.s32 %v171, 24
    %v254 = vadd.s32 %v172, 24
    %v255 = vadd.s32 %v173, 24
    %v256 = vadd.s32 %v174, 24
    %v257 = vadd.s32 %v175, 24
    %v258 = vadd.s32 %v176, 24
    %v259 = vadd.s32 %v177, 24
    %v260 = vadd.s32 %v178, 24
    %v261 = vadd.s32 %v179, 24
    %262 = vset.pattern.permute.xlu0 0
    %263 = vperm.xlu0 %262, %v246
    %v264 = vpop.permute.xlu0 %263
    %265 = vset.pattern.permute.xlu0 0
    %266 = vperm.xlu0 %265, %v247
    %v267 = vpop.permute.xlu0 %266
    %268 = vset.pattern.permute.xlu0 0
    %269 = vperm.xlu0 %268, %v248
    %v270 = vpop.permute.xlu0 %269
    %271 = vset.pattern.permute.xlu0 0
    %272 = vperm.xlu0 %271, %v249
    %v273 = vpop.permute.xlu0 %272
    %274 = vset.pattern.permute.xlu0 0
    %275 = vperm.xlu0 %274, %v250
    %v276 = vpop.permute.xlu0 %275
    %277 = vset.pattern.permute.xlu0 0
    %278 = vperm.xlu0 %277, %v251
    %v279 = vpop.permute.xlu0 %278
    %280 = vset.pattern.permute.xlu0 0
    %281 = vperm.xlu0 %280, %v252
    %v282 = vpop.permute.xlu0 %281
    %283 = vset.pattern.permute.xlu0 0
    %284 = vperm.xlu0 %283, %v253
    %v285 = vpop.permute.xlu0 %284
    %286 = vset.pattern.permute.xlu0 0
    %287 = vperm.xlu0 %286, %v254
    %v288 = vpop.permute.xlu0 %287
    %289 = vset.pattern.permute.xlu0 0
    %290 = vperm.xlu0 %289, %v255
    %v291 = vpop.permute.xlu0 %290
    %292 = vset.pattern.permute.xlu0 0
    %293 = vperm.xlu0 %292, %v256
    %v294 = vpop.permute.xlu0 %293
    %295 = vset.pattern.permute.xlu0 0
    %296 = vperm.xlu0 %295, %v257
    %v297 = vpop.permute.xlu0 %296
    %298 = vset.pattern.permute.xlu0 0
    %299 = vperm.xlu0 %298, %v258
    %v300 = vpop.permute.xlu0 %299
    %301 = vset.pattern.permute.xlu0 0
    %302 = vperm.xlu0 %301, %v259
    %v303 = vpop.permute.xlu0 %302
    %304 = vset.pattern.permute.xlu0 0
    %305 = vperm.xlu0 %304, %v260
    %v306 = vpop.permute.xlu0 %305
    %307 = vset.pattern.permute.xlu0 0
    %308 = vperm.xlu0 %307, %v261
    %v309 = vpop.permute.xlu0 %308
    %vm310 = vcmp.eq.s32.totalorder %v181, %v264
    %vm311 = vcmp.eq.s32.totalorder %v181, %v267
    %vm312 = vcmp.eq.s32.totalorder %v181, %v270
    %vm313 = vcmp.eq.s32.totalorder %v181, %v273
    %vm314 = vcmp.eq.s32.totalorder %v181, %v276
    %vm315 = vcmp.eq.s32.totalorder %v181, %v279
    %vm316 = vcmp.eq.s32.totalorder %v181, %v282
    %vm317 = vcmp.eq.s32.totalorder %v181, %v285
    %vm318 = vcmp.eq.s32.totalorder %v181, %v288
    %vm319 = vcmp.eq.s32.totalorder %v181, %v291
    %vm320 = vcmp.eq.s32.totalorder %v181, %v294
    %vm321 = vcmp.eq.s32.totalorder %v181, %v297
    %vm322 = vcmp.eq.s32.totalorder %v181, %v300
    %vm323 = vcmp.eq.s32.totalorder %v181, %v303
    %vm324 = vcmp.eq.s32.totalorder %v181, %v306
    %vm325 = vcmp.eq.s32.totalorder %v181, %v309
    %vm326 = vmor %vm230, %vm310
    %vm327 = vmor %vm231, %vm311
    %vm328 = vmor %vm232, %vm312
    %vm329 = vmor %vm233, %vm313
    %vm330 = vmor %vm234, %vm314
    %vm331 = vmor %vm235, %vm315
    %vm332 = vmor %vm236, %vm316
    %vm333 = vmor %vm237, %vm317
    %vm334 = vmor %vm238, %vm318
    %vm335 = vmor %vm239, %vm319
    %vm336 = vmor %vm240, %vm320
    %vm337 = vmor %vm241, %vm321
    %vm338 = vmor %vm242, %vm322
    %vm339 = vmor %vm243, %vm323
    %vm340 = vmor %vm244, %vm324
    %vm341 = vmor %vm245, %vm325
    %v342 = vsel %vm326, 1, 0
    %v343 = vsel %vm327, 1, 0
    %v344 = vsel %vm328, 1, 0
    %v345 = vsel %vm329, 1, 0
    %v346 = vsel %vm330, 1, 0
    %v347 = vsel %vm331, 1, 0
    %v348 = vsel %vm332, 1, 0
    %v349 = vsel %vm333, 1, 0
    %v350 = vsel %vm334, 1, 0
    %v351 = vsel %vm335, 1, 0
    %v352 = vsel %vm336, 1, 0
    %v353 = vsel %vm337, 1, 0
    %v354 = vsel %vm338, 1, 0
    %v355 = vsel %vm339, 1, 0
    %v356 = vsel %vm340, 1, 0
    %v357 = vsel %vm341, 1, 0
    %v358 = vcvt.s32.f32 %v342
    %v359 = vcvt.s32.f32 %v343
    %v360 = vcvt.s32.f32 %v344
    %v361 = vcvt.s32.f32 %v345
    %v362 = vcvt.s32.f32 %v346
    %v363 = vcvt.s32.f32 %v347
    %v364 = vcvt.s32.f32 %v348
    %v365 = vcvt.s32.f32 %v349
    %v366 = vcvt.s32.f32 %v350
    %v367 = vcvt.s32.f32 %v351
    %v368 = vcvt.s32.f32 %v352
    %v369 = vcvt.s32.f32 %v353
    %v370 = vcvt.s32.f32 %v354
    %v371 = vcvt.s32.f32 %v355
    %v372 = vcvt.s32.f32 %v356
    %v373 = vcvt.s32.f32 %v357
    %v374 = vld [vmem:[#allocation2] sm:$0xff]
    %v375 = vld [vmem:[#allocation2 + $0x8] sm:$0xff]
    %v376 = vld [vmem:[#allocation2 + $0x10] sm:$0xff]
    %v377 = vld [vmem:[#allocation2 + $0x18] sm:$0xff]
    %v378 = vld [vmem:[#allocation2 + $0x20] sm:$0xff]
    %v379 = vld [vmem:[#allocation2 + $0x28] sm:$0xff]
    %vm380 = vcmask 392192
    %v382 = vsel %vm380, %v358, 0
    %v385 = vsel %vm380, %v359, 0
    %v388 = vsel %vm380, %v360, 0
    %v391 = vsel %vm380, %v361, 0
    %v394 = vsel %vm380, %v362, 0
    %v397 = vsel %vm380, %v363, 0
    %v400 = vsel %vm380, %v364, 0
    %v403 = vsel %vm380, %v365, 0
    %v406 = vsel %vm380, %v366, 0
    %v409 = vsel %vm380, %v367, 0
    %v412 = vsel %vm380, %v368, 0
    %v415 = vsel %vm380, %v369, 0
    %v418 = vsel %vm380, %v370, 0
    %v421 = vsel %vm380, %v371, 0
    %v424 = vsel %vm380, %v372, 0
    %v427 = vsel %vm380, %v373, 0
    %429 = vmatprep.subr.mxu0 0.0
    %430 = vmatpush1.msra.mxu0 0.0
    %431 = vmatprep.subr.mxu0 0.0
    %432 = vmatpush1.msra.mxu0 0.0
    %433 = vmatprep.subr.mxu0 0.0
    %434 = vmatpush1.msra.mxu0 0.0
    %435 = vmatprep.subr.mxu0 0.0
    %436 = vmatpush1.msra.mxu0 0.0
    %437 = vmatprep.subr.mxu0 0.0
    %438 = vmatpush1.msra.mxu0 0.0
    %439 = vmatprep.subr.mxu0 0.0
    %440 = vmatpush1.msra.mxu0 0.0
    %441 = vmatprep.subr.mxu0 0.0
    %442 = vmatpush1.msra.mxu0 0.0
    %443 = vmatprep.subr.mxu0 0.0
    %444 = vmatpush1.msra.mxu0 0.0
    %445 = vmatprep.subr.mxu0 0.0
    %446 = vmatpush1.msra.mxu0 0.0
    %447 = vmatprep.subr.mxu0 0.0
    %448 = vmatpush1.msra.mxu0 0.0
    %449 = vmatprep.subr.mxu0 0.0
    %450 = vmatpush1.msra.mxu0 %v379
    %451 = vmatprep.subr.mxu0 0.0
    %452 = vmatpush1.msra.mxu0 %v378
    %453 = vmatprep.subr.mxu0 0.0
    %454 = vmatpush1.msra.mxu0 %v377
    %455 = vmatprep.subr.mxu0 0.0
    %456 = vmatpush1.msra.mxu0 %v376
    %457 = vmatprep.subr.mxu0 0.0
    %458 = vmatpush1.msra.mxu0 %v375
    %459 = vmatprep.subr.mxu0 0.0
    %460 = vmatpush1.msra.mxu0 %v374
    %461 = vmatprep.subr.mxu0 0.0
    %462 = vmatpush2.msra.mxu0 0.0
    %463 = vmatprep.subr.mxu0 0.0
    %464 = vmatpush2.msra.mxu0 0.0
    %465 = vmatprep.subr.mxu0 0.0
    %466 = vmatpush2.msra.mxu0 0.0
    %467 = vmatprep.subr.mxu0 0.0
    %468 = vmatpush2.msra.mxu0 0.0
    %469 = vmatprep.subr.mxu0 0.0
    %470 = vmatpush2.msra.mxu0 0.0
    %471 = vmatprep.subr.mxu0 0.0
    %472 = vmatpush2.msra.mxu0 0.0
    %473 = vmatprep.subr.mxu0 0.0
    %474 = vmatpush2.msra.mxu0 0.0
    %475 = vmatprep.subr.mxu0 0.0
    %476 = vmatpush2.msra.mxu0 0.0
    %477 = vmatprep.subr.mxu0 0.0
    %478 = vmatpush2.msra.mxu0 0.0
    %479 = vmatprep.subr.mxu0 0.0
    %480 = vmatpush2.msra.mxu0 0.0
    %481 = vmatprep.subr.mxu0 0.0
    %482 = vmatpush2.msra.mxu0 0.0
    %483 = vmatprep.subr.mxu0 0.0
    %484 = vmatpush2.msra.mxu0 0.0
    %485 = vmatprep.subr.mxu0 0.0
    %486 = vmatpush2.msra.mxu0 0.0
    %487 = vmatprep.subr.mxu0 0.0
    %488 = vmatpush2.msra.mxu0 0.0
    %489 = vmatprep.subr.mxu0 0.0
    %490 = vmatpush2.msra.mxu0 0.0
    %491 = vmatprep.subr.mxu0 0.0
    %492 = vmatpush2.msra.mxu0 0.0
    %493 = vmatprep.mubr.f32.mxu0 0.0
    %494 = vmatmul.mubr.f32.gmra.mxu0 %v382
    %v495 = vpop.f32.mrf.mxu0
    %v496 = vadd.f32 0.0, %v495
    %v497 = vpop.f32.mrf.mxu0
    %498 = vmatprep.mubr.f32.mxu0 0.0
    %499 = vmatmul.mubr.f32.gmra.mxu0 %v385
    %v500 = vpop.f32.mrf.mxu0
    %v501 = vadd.f32 0.0, %v500
    %v502 = vpop.f32.mrf.mxu0
    %503 = vmatprep.mubr.f32.mxu0 0.0
    %504 = vmatmul.mubr.f32.gmra.mxu0 %v388
    %v505 = vpop.f32.mrf.mxu0
    %v506 = vadd.f32 0.0, %v505
    %v507 = vpop.f32.mrf.mxu0
    %508 = vmatprep.mubr.f32.mxu0 0.0
    %509 = vmatmul.mubr.f32.gmra.mxu0 %v391
    %v510 = vpop.f32.mrf.mxu0
    %v511 = vadd.f32 0.0, %v510
    %v512 = vpop.f32.mrf.mxu0
    %513 = vmatprep.mubr.f32.mxu0 0.0
    %514 = vmatmul.mubr.f32.gmra.mxu0 %v394
    %v515 = vpop.f32.mrf.mxu0
    %v516 = vadd.f32 0.0, %v515
    %v517 = vpop.f32.mrf.mxu0
    %518 = vmatprep.mubr.f32.mxu0 0.0
    %519 = vmatmul.mubr.f32.gmra.mxu0 %v397
    %v520 = vpop.f32.mrf.mxu0
    %v521 = vadd.f32 0.0, %v520
    %v522 = vpop.f32.mrf.mxu0
    %523 = vmatprep.mubr.f32.mxu0 0.0
    %524 = vmatmul.mubr.f32.gmra.mxu0 %v400
    %v525 = vpop.f32.mrf.mxu0
    %v526 = vadd.f32 0.0, %v525
    %v527 = vpop.f32.mrf.mxu0
    %528 = vmatprep.mubr.f32.mxu0 0.0
    %529 = vmatmul.mubr.f32.gmra.mxu0 %v403
    %v530 = vpop.f32.mrf.mxu0
    %v531 = vadd.f32 0.0, %v530
    %v532 = vpop.f32.mrf.mxu0
    %533 = vmatprep.mubr.f32.mxu0 0.0
    %534 = vmatmul.mubr.f32.gmra.mxu0 %v406
    %v535 = vpop.f32.mrf.mxu0
    %v536 = vadd.f32 0.0, %v535
    %v537 = vpop.f32.mrf.mxu0
    %538 = vmatprep.mubr.f32.mxu0 0.0
    %539 = vmatmul.mubr.f32.gmra.mxu0 %v409
    %v540 = vpop.f32.mrf.mxu0
    %v541 = vadd.f32 0.0, %v540
    %v542 = vpop.f32.mrf.mxu0
    %543 = vmatprep.mubr.f32.mxu0 0.0
    %544 = vmatmul.mubr.f32.gmra.mxu0 %v412
    %v545 = vpop.f32.mrf.mxu0
    %v546 = vadd.f32 0.0, %v545
    %v547 = vpop.f32.mrf.mxu0
    %548 = vmatprep.mubr.f32.mxu0 0.0
    %549 = vmatmul.mubr.f32.gmra.mxu0 %v415
    %v550 = vpop.f32.mrf.mxu0
    %v551 = vadd.f32 0.0, %v550
    %v552 = vpop.f32.mrf.mxu0
    %553 = vmatprep.mubr.f32.mxu0 0.0
    %554 = vmatmul.mubr.f32.gmra.mxu0 %v418
    %v555 = vpop.f32.mrf.mxu0
    %v556 = vadd.f32 0.0, %v555
    %v557 = vpop.f32.mrf.mxu0
    %558 = vmatprep.mubr.f32.mxu0 0.0
    %559 = vmatmul.mubr.f32.gmra.mxu0 %v421
    %v560 = vpop.f32.mrf.mxu0
    %v561 = vadd.f32 0.0, %v560
    %v562 = vpop.f32.mrf.mxu0
    %563 = vmatprep.mubr.f32.mxu0 0.0
    %564 = vmatmul.mubr.f32.gmra.mxu0 %v424
    %v565 = vpop.f32.mrf.mxu0
    %v566 = vadd.f32 0.0, %v565
    %v567 = vpop.f32.mrf.mxu0
    %568 = vmatprep.mubr.f32.mxu0 0.0
    %569 = vmatmul.mubr.f32.gmra.mxu0 %v427
    %v570 = vpop.f32.mrf.mxu0
    %v571 = vadd.f32 0.0, %v570
    %v572 = vpop.f32.mrf.mxu0
    %573 = vdwg.mxu0
    %v574 = vmul.f32 %v496, 0.3
    %v575 = vmul.f32 %v501, 0.3
    %v576 = vmul.f32 %v506, 0.3
    %v577 = vmul.f32 %v511, 0.3
    %v578 = vmul.f32 %v516, 0.3
    %v579 = vmul.f32 %v521, 0.3
    %v580 = vmul.f32 %v526, 0.3
    %v581 = vmul.f32 %v531, 0.3
    %v582 = vmul.f32 %v536, 0.3
    %v583 = vmul.f32 %v541, 0.3
    %v584 = vmul.f32 %v546, 0.3
    %v585 = vmul.f32 %v551, 0.3
    %v586 = vmul.f32 %v556, 0.3
    %v587 = vmul.f32 %v561, 0.3
    %v588 = vmul.f32 %v566, 0.3
    %v589 = vmul.f32 %v571, 0.3
    %v590 = vmax.f32 %v496, %v574
    %v591 = vmax.f32 %v501, %v575
    %v592 = vmax.f32 %v506, %v576
    %v593 = vmax.f32 %v511, %v577
    %v594 = vmax.f32 %v516, %v578
    %v595 = vmax.f32 %v521, %v579
    %v596 = vmax.f32 %v526, %v580
    %v597 = vmax.f32 %v531, %v581
    %v598 = vmax.f32 %v536, %v582
    %v599 = vmax.f32 %v541, %v583
    %v600 = vmax.f32 %v546, %v584
    %v601 = vmax.f32 %v551, %v585
    %v602 = vmax.f32 %v556, %v586
    %v603 = vmax.f32 %v561, %v587
    %v604 = vmax.f32 %v566, %v588
    %v605 = vmax.f32 %v571, %v589
    %v606 = vld [vmem:[%s5] sm:$0x1]
    %v607 = vlaneseq
    %v608 = vshrl.u32 %v607, 7
    %v609 = vadd.s32 %v608, 8
    %v610 = vadd.s32 %v608, 16
    %v611 = vlaneseq
    %v612 = vshrl.u32 %v611, 7
    %v613 = vsub.s32 0, %v612
    %v614 = vrot.slane %v606, %v613
    %vm615 = vcmp.eq.s32.totalorder %v608, %v614
    %vm616 = vcmp.eq.s32.totalorder %v609, %v614
    %vm617 = vcmp.eq.s32.totalorder %v610, %v614
    %v618 = vsel %vm615, 1, 0
    %v619 = vsel %vm616, 1, 0
    %v620 = vsel %vm617, 1, 0
    %v621 = vcvt.s32.f32 %v618
    %v622 = vcvt.s32.f32 %v619
    %v623 = vcvt.s32.f32 %v620
    %v624 = vld [vmem:[#allocation3] sm:$0xff]
    %v625 = vld [vmem:[#allocation3 + $0x8] sm:$0xff]
    %v626 = vld [vmem:[#allocation3 + $0x10] sm:$0xff]
    %627 = vmatprep.subr.mxu0 0.0
    %628 = vmatpush1.msra.mxu0 %v605
    %629 = vmatprep.subr.mxu0 0.0
    %630 = vmatpush1.msra.mxu0 %v604
    %631 = vmatprep.subr.mxu0 0.0
    %632 = vmatpush1.msra.mxu0 %v603
    %633 = vmatprep.subr.mxu0 0.0
    %634 = vmatpush1.msra.mxu0 %v602
    %635 = vmatprep.subr.mxu0 0.0
    %636 = vmatpush1.msra.mxu0 %v601
    %637 = vmatprep.subr.mxu0 0.0
    %638 = vmatpush1.msra.mxu0 %v600
    %639 = vmatprep.subr.mxu0 0.0
    %640 = vmatpush1.msra.mxu0 %v599
    %641 = vmatprep.subr.mxu0 0.0
    %642 = vmatpush1.msra.mxu0 %v598
    %643 = vmatprep.subr.mxu0 0.0
    %644 = vmatpush1.msra.mxu0 %v597
    %645 = vmatprep.subr.mxu0 0.0
    %646 = vmatpush1.msra.mxu0 %v596
    %647 = vmatprep.subr.mxu0 0.0
    %648 = vmatpush1.msra.mxu0 %v595
    %649 = vmatprep.subr.mxu0 0.0
    %650 = vmatpush1.msra.mxu0 %v594
    %651 = vmatprep.subr.mxu0 0.0
    %652 = vmatpush1.msra.mxu0 %v593
    %653 = vmatprep.subr.mxu0 0.0
    %654 = vmatpush1.msra.mxu0 %v592
    %655 = vmatprep.subr.mxu0 0.0
    %656 = vmatpush1.msra.mxu0 %v591
    %657 = vmatprep.subr.mxu0 0.0
    %658 = vmatpush1.msra.mxu0 %v590
    %659 = vmatprep.subr.mxu0 0.0
    %660 = vmatpush2.msra.mxu0 0.0
    %661 = vmatprep.subr.mxu0 0.0
    %662 = vmatpush2.msra.mxu0 0.0
    %663 = vmatprep.subr.mxu0 0.0
    %664 = vmatpush2.msra.mxu0 0.0
    %665 = vmatprep.subr.mxu0 0.0
    %666 = vmatpush2.msra.mxu0 0.0
    %667 = vmatprep.subr.mxu0 0.0
    %668 = vmatpush2.msra.mxu0 0.0
    %669 = vmatprep.subr.mxu0 0.0
    %670 = vmatpush2.msra.mxu0 0.0
    %671 = vmatprep.subr.mxu0 0.0
    %672 = vmatpush2.msra.mxu0 0.0
    %673 = vmatprep.subr.mxu0 0.0
    %674 = vmatpush2.msra.mxu0 0.0
    %675 = vmatprep.subr.mxu0 0.0
    %676 = vmatpush2.msra.mxu0 0.0
    %677 = vmatprep.subr.mxu0 0.0
    %678 = vmatpush2.msra.mxu0 0.0
    %679 = vmatprep.subr.mxu0 0.0
    %680 = vmatpush2.msra.mxu0 0.0
    %681 = vmatprep.subr.mxu0 0.0
    %682 = vmatpush2.msra.mxu0 0.0
    %683 = vmatprep.subr.mxu0 0.0
    %684 = vmatpush2.msra.mxu0 0.0
    %685 = vmatprep.subr.mxu0 0.0
    %686 = vmatpush2.msra.mxu0 0.0
    %687 = vmatprep.subr.mxu0 0.0
    %688 = vmatpush2.msra.mxu0 0.0
    %689 = vmatprep.subr.mxu0 0.0
    %690 = vmatpush2.msra.mxu0 0.0
    %691 = vmatprep.mubr.f32.mxu0 0.0
    %692 = vmatmul.mubr.f32.gmra.mxu0 %v621
    %v693 = vpop.f32.mrf.mxu0
    %v694 = vadd.f32 0.0, %v693
    %v695 = vpop.f32.mrf.mxu0
    %696 = vmatprep.mubr.f32.mxu0 0.0
    %697 = vmatmul.mubr.f32.gmra.mxu0 %v622
    %v698 = vpop.f32.mrf.mxu0
    %v699 = vadd.f32 0.0, %v698
    %v700 = vpop.f32.mrf.mxu0
    %701 = vmatprep.mubr.f32.mxu0 0.0
    %702 = vmatmul.mubr.f32.gmra.mxu0 %v623
    %v703 = vpop.f32.mrf.mxu0
    %v704 = vadd.f32 0.0, %v703
    %v705 = vpop.f32.mrf.mxu0
    %706 = vdwg.mxu0
    %v707 = vadd.f32 %v624, %v694
    %v708 = vadd.f32 %v625, %v699
    %v709 = vadd.f32 %v626, %v704
    %710 = vst [vmem:[#allocation3] sm:$0xff] %v707
    %711 = vst [vmem:[#allocation3 + $0x8] sm:$0xff] %v708
    %712 = vst [vmem:[#allocation3 + $0x10] sm:$0xff] %v709
    // Predicated region
    $region34: #{tpu_custom_call.1} parent=1 // pred_check
      %p713 = pneg %p27
    $region35: #{tpu_custom_call.1} parent=1 // pred_check_branch
      %715 = sbr.rel (%p713) target = $region37
    $region36: #{tpu_custom_call.1} parent=1 // pred_region
      %v716 = vld [vmem:[#allocation3] sm:$0xff]
      %v717 = vld [vmem:[#allocation3 + $0x8] sm:$0xff]
      %v718 = vld [vmem:[#allocation3 + $0x10] sm:$0xff]
      %v719 = vld [vmem:[%s6] sm:$0xff]
      %v720 = vld [vmem:[%s6 + $0x8] sm:$0xff]
      %v721 = vld [vmem:[%s6 + $0x10] sm:$0xff]
      %723 = vset.pattern.permute.xlu0 0
      %724 = vperm.xlu0 %723, %v719
      %v725 = vpop.permute.xlu0 %724
      %728 = vset.pattern.permute.xlu0 0
      %729 = vperm.xlu0 %728, %v720
      %v730 = vpop.permute.xlu0 %729
      %733 = vset.pattern.permute.xlu0 0
      %734 = vperm.xlu0 %733, %v721
      %v735 = vpop.permute.xlu0 %734
      %v737 = vmul.f32 %v716, %v725
      %v738 = vmul.f32 %v717, %v730
      %v739 = vmul.f32 %v718, %v735
      %740 = vst [vmem:[#allocation3] sm:$0xff] %v737
      %741 = vst [vmem:[#allocation3 + $0x8] sm:$0xff] %v738
      %742 = vst [vmem:[#allocation3 + $0x10] sm:$0xff] %v739
    $region37: #{tpu_custom_call.1} parent=1 // pred_fallthru
      _
    // Predicated region
    $region38: #{tpu_custom_call.1} parent=1 // pred_check
      _
    $region39: #{tpu_custom_call.1} parent=1 // pred_check_branch
      %744 = sbr.rel (0) target = $region41
    $region40: #{tpu_custom_call.1} parent=1 // pred_region
      %s746 = ssub.s32 384, 384
      %747 = vsyncadd [#allocation4], %s746
      %s748 = sshll.u32 [#allocation3], 4
      %s749 = int_to_ptr.vmem [resolvable:$true] %s748
      %754 = dma.vmem_to_hbm [thread:$0]  %s749, 384, %s7, [#allocation4], 128, 128, 8
    $region41: #{tpu_custom_call.1} parent=1 // pred_fallthru
      _
    // Predicated region
    $region42: #{tpu_custom_call.1} parent=1 // pred_check
      _
    $region43: #{tpu_custom_call.1} parent=1 // pred_check_branch
      %756 = sbr.rel (0) target = $region45
    $region44: #{tpu_custom_call.1} parent=1 // pred_region
      %757 = dma.done [#allocation4], 384
    $region45: #{tpu_custom_call.1} parent=1 // pred_fallthru
      _
    %758 = vsyncpa [#allocation4], 1

</llo_original>
